<compile_context>
chip_gen: v6e
topology: v6e:2x2x1
jax: 0.10.0
libtpu: 0.0.40
codegen_flags: <defaults>
</compile_context>

<pallas_src>
import functools

import jax
import jax.numpy as jnp
from jax import lax
from jax.experimental import pallas as pl
from jax.experimental.pallas import tpu as pltpu


def _make_kernel(*, instance_norm_active, t_h, n_h, w_out, c4, c_out,
                 eps=1e-5, slope=0.2):
    p_tile = t_h * w_out

    def kernel(xm_ref, xe_ref, w_ref, b_ref, o_ref, sum_ref, ssq_ref):
        # xm_ref : (1, t_h, W2, 4*C_in)  main space-to-depth rows for this tile
        # xe_ref : (1, 1,  W2, 4*C_in)  halo row (row (i+1)*t_h), needed by dh=1 taps
        # w_ref  : (4, 4*C_in, C_out)    conv weight, one slab per (dh, dw) shift
        # b_ref  : (1, C_out)            bias (f32)
        # o_ref  : (1, C_out, n_h, t_h*W_out)  per-image output block (resident over i)
        # sum_ref / ssq_ref : (C_out, 1) f32 running per-channel sum / sum-of-squares
        i = pl.program_id(1)

        if instance_norm_active:
            @pl.when(i == 0)
            def _init():
                sum_ref[...] = jnp.zeros_like(sum_ref)
                ssq_ref[...] = jnp.zeros_like(ssq_ref)

        xm = xm_ref[0]                                      # (t_h, W2, 4C)
        xe = xe_ref[0]                                      # (1,  W2, 4C)
        xr = jnp.concatenate([xm, xe], axis=0)              # (t_h+1, W2, 4C)

        # Conv as 4 MXU matmuls (one per (dh, dw) shift), f32 accumulation.
        acc = jnp.zeros((p_tile, c_out), jnp.float32)
        for dh in range(2):
            for dw in range(2):
                v = xr[dh:dh + t_h, dw:dw + w_out, :]        # (t_h, W_out, 4C)
                v = v.reshape(p_tile, c4)
                acc = acc + jnp.dot(v, w_ref[2 * dh + dw],
                                    preferred_element_type=jnp.float32)

        y = acc + b_ref[...]                                 # (p_tile, C_out) f32
        # Lane-dense orientation: channels on sublanes, spatial on lanes (XLU slot).
        y_t = jnp.transpose(y)                               # (C_out, p_tile) f32

        if instance_norm_active:
            # Single-pass statistics, finalized on the last spatial tile.
            sum_ref[...] += jnp.sum(y_t, axis=1, keepdims=True)
            ssq_ref[...] += jnp.sum(y_t * y_t, axis=1, keepdims=True)
            # Stage the (still unnormalized) tile in the resident output block.
            o_ref[0, :, i, :] = y_t.astype(o_ref.dtype)

            @pl.when(i == n_h - 1)
            def _finalize():
                inv_p = 1.0 / float(n_h * p_tile)
                mean = sum_ref[...] * inv_p                  # (C_out, 1)
                var = ssq_ref[...] * inv_p - mean * mean     # biased variance
                var = jnp.maximum(var, 0.0)
                rstd = lax.rsqrt(var + eps)                  # EUP slot
                for j in range(n_h):                         # static unroll
                    yj = o_ref[0, :, j, :].astype(jnp.float32)
                    yj = (yj - mean) * rstd
                    yj = jnp.where(yj >= 0, yj, slope * yj)
                    o_ref[0, :, j, :] = yj.astype(o_ref.dtype)
        else:
            y_t = jnp.where(y_t >= 0, y_t, slope * y_t)
            o_ref[0, :, i, :] = y_t.astype(o_ref.dtype)

    return kernel


def _pick_t_h(h_out, w_out, c4, in_itemsize):
    """Largest divisor of h_out keeping per-step input tile / transients modest
    (so realistic layer sizes fit v7x's 64 MiB VMEM with room for pipelining)."""
    w2 = w_out + 1
    best = 1
    for t in range(1, h_out + 1):
        if h_out % t:
            continue
        in_tile = (t + 1) * w2 * c4 * in_itemsize            # main + halo rows
        transients = t * w_out * (c4 * in_itemsize + 16)     # shifted view + f32 acc
        if in_tile <= (2 << 20) and transients <= (4 << 20):
            best = t
    return best


def _conv_inst_norm_lrelu(x, weight, bias, *, instance_norm_active=True,
                          compute_dtype=jnp.bfloat16, out_dtype=None, t_h=None):
    """x: (N, C_in, H, W) NCHW; weight: (C_out, C_in, 4, 4); bias: (C_out,).
    Returns (N, C_out, H/2, W/2) NCHW, matching the PyTorch module forward."""
    n, c_in, h, w = x.shape
    c_out, c_in_w, kh, kw = weight.shape
    assert (kh, kw) == (4, 4) and c_in_w == c_in
    assert h % 2 == 0 and w % 2 == 0, "even spatial dims required (k=4, s=2, p=1)"
    if out_dtype is None:
        out_dtype = x.dtype

    h_out, w_out = h // 2, w // 2
    h2, w2 = h_out + 1, w_out + 1
    c4 = 4 * c_in

    in_itemsize = jnp.dtype(compute_dtype).itemsize
    if t_h is None:
        t_h = _pick_t_h(h_out, w_out, c4, in_itemsize)
    assert h_out % t_h == 0, "t_h must divide H_out"
    n_h = h_out // t_h
    p_tile = t_h * w_out

    # --- cheap XLA-side layout glue (~1x input bytes; replaces the 4x im2col) ---
    # zero-pad, NHWC, space-to-depth: xs[n, i, j, (oh*2+ow)*C_in + c] = x_pad[n, c, 2i+oh, 2j+ow]
    xp = jnp.pad(x, ((0, 0), (0, 0), (1, 1), (1, 1)))
    xp = jnp.transpose(xp, (0, 2, 3, 1))                      # (N, H+2, W+2, C_in)
    xs = xp.reshape(n, h2, 2, w2, 2, c_in)
    xs = jnp.transpose(xs, (0, 1, 3, 2, 4, 5)).reshape(n, h2, w2, c4)
    xs = xs.astype(compute_dtype)

    # weight -> (4, 4*C_in, C_out): slab (2*dh+dw) holds taps (kh=2dh+oh, kw=2dw+ow),
    # rows ordered (oh, ow, ci) to match the space-to-depth channel order.
    wt = jnp.transpose(weight, (2, 3, 1, 0))                  # (kh, kw, C_in, C_out)
    wt = wt.reshape(2, 2, 2, 2, c_in, c_out)                  # (dh, oh, dw, ow, ci, co)
    wt = jnp.transpose(wt, (0, 2, 1, 3, 4, 5)).reshape(4, c4, c_out)
    wt = wt.astype(compute_dtype)
    b2 = bias.reshape(1, c_out).astype(jnp.float32)

    kernel = _make_kernel(instance_norm_active=instance_norm_active, t_h=t_h,
                          n_h=n_h, w_out=w_out, c4=c4, c_out=c_out)

    out = pl.pallas_call(
        kernel,
        out_shape=jax.ShapeDtypeStruct((n, c_out, n_h, p_tile), out_dtype),
        grid_spec=pltpu.PrefetchScalarGridSpec(
            num_scalar_prefetch=0,
            grid=(n, n_h),
            in_specs=[
                # t_h rows of the space-to-depth input for this tile
                pl.BlockSpec((1, t_h, w2, c4), lambda b, i: (b, i, 0, 0)),
                # +1 halo row (row (i+1)*t_h) needed by the dh=1 taps
                pl.BlockSpec((1, 1, w2, c4),
                             lambda b, i: (b, (i + 1) * t_h, 0, 0)),
                # weight / bias stay resident (constant index maps)
                pl.BlockSpec((4, c4, c_out), lambda b, i: (0, 0, 0)),
                pl.BlockSpec((1, c_out), lambda b, i: (0, 0)),
            ],
            # Whole per-image output block stays resident across the spatial-tile
            # axis so the InstanceNorm can be finalized in place on the last tile.
            out_specs=pl.BlockSpec((1, c_out, n_h, p_tile),
                                   lambda b, i: (b, 0, 0, 0)),
            scratch_shapes=[pltpu.VMEM((c_out, 1), jnp.float32),
                            pltpu.VMEM((c_out, 1), jnp.float32)],
        ),
        compiler_params=pltpu.CompilerParams(
            dimension_semantics=("parallel", "arbitrary"),
            vmem_limit_bytes=48 * 1024 * 1024),
    )(xs, xs, wt, b2)

    # (N, C_out, n_h, t_h*W_out) -> NCHW is a free, row-major-compatible reshape.
    return out.reshape(n, c_out, h_out, w_out)


conv_inst_norm_lrelu = jax.jit(
    _conv_inst_norm_lrelu,
    static_argnames=("instance_norm_active", "compute_dtype", "out_dtype", "t_h"))


def _reference(x, weight, bias, instance_norm_active, eps=1e-5, slope=0.2):
    """Pure-JAX (f32) reference of the PyTorch forward."""
    y = lax.conv_general_dilated(
        x, weight, window_strides=(2, 2), padding=((1, 1), (1, 1)),
        dimension_numbers=("NCHW", "OIHW", "NCHW"))
    y = y + bias.reshape(1, -1, 1, 1)
    if instance_norm_active:
        mean = jnp.mean(y, axis=(2, 3), keepdims=True)
        var = jnp.mean((y - mean) ** 2, axis=(2, 3), keepdims=True)
        y = (y - mean) * lax.rsqrt(var + eps)
    return jnp.where(y >= 0, y, slope * y)


if __name__ == "__main__":
    # Module config: size_in=4, size_out=8, instance_norm_active=True
    size_in, size_out = 4, 8
    batch, spatial = 2, 16

    key = jax.random.PRNGKey(0)
    kx, kw, kb = jax.random.split(key, 3)

    x = jax.random.normal(kx, (batch, size_in, spatial, spatial), dtype=jnp.float32)
    fan_in = size_in * 4 * 4
    bound = 1.0 / (fan_in ** 0.5)
    weight = jax.random.uniform(kw, (size_out, size_in, 4, 4),
                                minval=-bound, maxval=bound, dtype=jnp.float32)
    bias = jax.random.uniform(kb, (size_out,), minval=-bound, maxval=bound,
                              dtype=jnp.float32)

    cases = [
        dict(instance_norm_active=True),          # default spatial tiling (single tile)
        dict(instance_norm_active=True, t_h=2),   # multi-tile: exercises the sum/sumsq
                                                  # accumulation + pl.when finalize path
        dict(instance_norm_active=False),         # norm-disabled branch
    ]
    for kwargs in cases:
        out = conv_inst_norm_lrelu(x, weight, bias, **kwargs)
        out = jax.block_until_ready(out)
        ref = _reference(x, weight, bias, kwargs["instance_norm_active"])
        assert out.shape == (batch, size_out, spatial // 2, spatial // 2), out.shape
        # bf16 MXU inputs (f32 accumulation / stats) vs the pure f32 reference.
        assert jnp.allclose(out, ref, atol=5e-2, rtol=5e-2), (
            "mismatch vs reference", kwargs, float(jnp.max(jnp.abs(out - ref))))

    print("KERNEL_OK")
</pallas_src>

<mosaic_0001>
module attributes {stable_mosaic.version = 11 : i64} {
  func.func @kernel(%arg0: i32, %arg1: i32, %arg2: memref<1x8x9x16xbf16, #tpu.memory_space<vmem>>, %arg3: memref<1x1x9x16xbf16, #tpu.memory_space<vmem>>, %arg4: memref<4x16x8xbf16, #tpu.memory_space<vmem>>, %arg5: memref<1x8xf32, #tpu.memory_space<vmem>>, %arg6: memref<1x8x1x64xf32, #tpu.memory_space<vmem>>, %arg7: memref<8x1xf32, #tpu.memory_space<vmem>>, %arg8: memref<8x1xf32, #tpu.memory_space<vmem>>) attributes {dimension_semantics = [#tpu.dimension_semantics<parallel>, #tpu.dimension_semantics<arbitrary>], iteration_bounds = array<i64: 2, 1>, scalar_prefetch = 0 : i64, scratch_operands = 2 : i64, tpu.core_type = #tpu.core_type<tc>, window_params = [{transform_indices = @transform_0, window_bounds = array<i64: 1, 8, 9, 16>}, {transform_indices = @transform_1, window_bounds = array<i64: 1, 1, 9, 16>}, {pipeline_mode = #tpu.pipeline_mode<synchronous>, transform_indices = @transform_2, window_bounds = array<i64: 4, 16, 8>}, {pipeline_mode = #tpu.pipeline_mode<synchronous>, transform_indices = @transform_3, window_bounds = array<i64: 1, 8>}, {transform_indices = @transform_4, window_bounds = array<i64: 1, 8, 1, 64>}]} {
    %c0_i32 = arith.constant 0 : i32
    %0 = arith.cmpi eq, %arg1, %c0_i32 : i32
    %1 = arith.extui %0 : i1 to i32
    %c0_i32_0 = arith.constant 0 : i32
    %2 = arith.cmpi ne, %1, %c0_i32_0 : i32
    scf.if %2 {
      %cst_38 = arith.constant 0.000000e+00 : f32
      %55 = vector.broadcast %cst_38 : f32 to vector<8x1xf32>
      %c0_39 = arith.constant 0 : index
      %c0_40 = arith.constant 0 : index
      %56 = vector.load %arg7[%c0_39, %c0_40] : memref<8x1xf32, #tpu.memory_space<vmem>>, vector<8x1xf32>
      tpu.vector_store %arg7[%c0_39, %c0_40], %55 {strides = array<i32>} : memref<8x1xf32, #tpu.memory_space<vmem>>, vector<8x1xf32>,
      %cst_41 = arith.constant 0.000000e+00 : f32
      %57 = vector.broadcast %cst_41 : f32 to vector<8x1xf32>
      %c0_42 = arith.constant 0 : index
      %c0_43 = arith.constant 0 : index
      %58 = vector.load %arg8[%c0_42, %c0_43] : memref<8x1xf32, #tpu.memory_space<vmem>>, vector<8x1xf32>
      tpu.vector_store %arg8[%c0_42, %c0_43], %57 {strides = array<i32>} : memref<8x1xf32, #tpu.memory_space<vmem>>, vector<8x1xf32>,
    } else {
    }
    %c0 = arith.constant 0 : index
    %c0_1 = arith.constant 0 : index
    %c0_2 = arith.constant 0 : index
    %c0_3 = arith.constant 0 : index
    %3 = vector.load %arg2[%c0, %c0_1, %c0_2, %c0_3] : memref<1x8x9x16xbf16, #tpu.memory_space<vmem>>, vector<1x8x9x16xbf16>
    %4 = vector.shape_cast %3 : vector<1x8x9x16xbf16> to vector<8x9x16xbf16>
    %c0_4 = arith.constant 0 : index
    %c0_5 = arith.constant 0 : index
    %c0_6 = arith.constant 0 : index
    %c0_7 = arith.constant 0 : index
    %5 = vector.load %arg3[%c0_4, %c0_5, %c0_6, %c0_7] : memref<1x1x9x16xbf16, #tpu.memory_space<vmem>>, vector<1x1x9x16xbf16>
    %6 = vector.shape_cast %5 : vector<1x1x9x16xbf16> to vector<1x9x16xbf16>
    %7 = tpu.concatenate %4, %6 in 0 : vector<8x9x16xbf16>, vector<1x9x16xbf16> -> vector<9x9x16xbf16>
    %cst = arith.constant 0.000000e+00 : f32
    %8 = vector.broadcast %cst : f32 to vector<64x8xf32>
    %9 = vector.extract_strided_slice %7 {offsets = [0, 0, 0], sizes = [8, 8, 16], strides = [1, 1, 1]} : vector<9x9x16xbf16> to vector<8x8x16xbf16>
    %10 = vector.shape_cast %9 : vector<8x8x16xbf16> to vector<64x16xbf16>
    %c0_8 = arith.constant 0 : index
    %c0_9 = arith.constant 0 : index
    %c0_10 = arith.constant 0 : index
    %11 = vector.load %arg4[%c0_8, %c0_9, %c0_10] : memref<4x16x8xbf16, #tpu.memory_space<vmem>>, vector<1x16x8xbf16>
    %12 = vector.shape_cast %11 : vector<1x16x8xbf16> to vector<16x8xbf16>
    %cst_11 = arith.constant dense<0.000000e+00> : vector<64x8xf32>
    %13 = tpu.matmul %10, %12, %cst_11 {dimension_numbers = #tpu.dot_dimension_numbers<[1], [0], [0], [1], [0, 0, 1, 1], [], []>} : vector<64x16xbf16>, vector<16x8xbf16>, vector<64x8xf32> -> vector<64x8xf32>
    %14 = arith.addf %8, %13 : vector<64x8xf32>
    %15 = vector.extract_strided_slice %7 {offsets = [0, 1, 0], sizes = [8, 8, 16], strides = [1, 1, 1]} : vector<9x9x16xbf16> to vector<8x8x16xbf16>
    %16 = vector.shape_cast %15 : vector<8x8x16xbf16> to vector<64x16xbf16>
    %c1 = arith.constant 1 : index
    %c0_12 = arith.constant 0 : index
    %c0_13 = arith.constant 0 : index
    %17 = vector.load %arg4[%c1, %c0_12, %c0_13] : memref<4x16x8xbf16, #tpu.memory_space<vmem>>, vector<1x16x8xbf16>
    %18 = vector.shape_cast %17 : vector<1x16x8xbf16> to vector<16x8xbf16>
    %cst_14 = arith.constant dense<0.000000e+00> : vector<64x8xf32>
    %19 = tpu.matmul %16, %18, %cst_14 {dimension_numbers = #tpu.dot_dimension_numbers<[1], [0], [0], [1], [0, 0, 1, 1], [], []>} : vector<64x16xbf16>, vector<16x8xbf16>, vector<64x8xf32> -> vector<64x8xf32>
    %20 = arith.addf %14, %19 : vector<64x8xf32>
    %21 = vector.extract_strided_slice %7 {offsets = [1, 0, 0], sizes = [8, 8, 16], strides = [1, 1, 1]} : vector<9x9x16xbf16> to vector<8x8x16xbf16>
    %22 = vector.shape_cast %21 : vector<8x8x16xbf16> to vector<64x16xbf16>
    %c2 = arith.constant 2 : index
    %c0_15 = arith.constant 0 : index
    %c0_16 = arith.constant 0 : index
    %23 = vector.load %arg4[%c2, %c0_15, %c0_16] : memref<4x16x8xbf16, #tpu.memory_space<vmem>>, vector<1x16x8xbf16>
    %24 = vector.shape_cast %23 : vector<1x16x8xbf16> to vector<16x8xbf16>
    %cst_17 = arith.constant dense<0.000000e+00> : vector<64x8xf32>
    %25 = tpu.matmul %22, %24, %cst_17 {dimension_numbers = #tpu.dot_dimension_numbers<[1], [0], [0], [1], [0, 0, 1, 1], [], []>} : vector<64x16xbf16>, vector<16x8xbf16>, vector<64x8xf32> -> vector<64x8xf32>
    %26 = arith.addf %20, %25 : vector<64x8xf32>
    %27 = vector.extract_strided_slice %7 {offsets = [1, 1, 0], sizes = [8, 8, 16], strides = [1, 1, 1]} : vector<9x9x16xbf16> to vector<8x8x16xbf16>
    %28 = vector.shape_cast %27 : vector<8x8x16xbf16> to vector<64x16xbf16>
    %c3 = arith.constant 3 : index
    %c0_18 = arith.constant 0 : index
    %c0_19 = arith.constant 0 : index
    %29 = vector.load %arg4[%c3, %c0_18, %c0_19] : memref<4x16x8xbf16, #tpu.memory_space<vmem>>, vector<1x16x8xbf16>
    %30 = vector.shape_cast %29 : vector<1x16x8xbf16> to vector<16x8xbf16>
    %cst_20 = arith.constant dense<0.000000e+00> : vector<64x8xf32>
    %31 = tpu.matmul %28, %30, %cst_20 {dimension_numbers = #tpu.dot_dimension_numbers<[1], [0], [0], [1], [0, 0, 1, 1], [], []>} : vector<64x16xbf16>, vector<16x8xbf16>, vector<64x8xf32> -> vector<64x8xf32>
    %32 = arith.addf %26, %31 : vector<64x8xf32>
    %c0_21 = arith.constant 0 : index
    %c0_22 = arith.constant 0 : index
    %33 = vector.load %arg5[%c0_21, %c0_22] : memref<1x8xf32, #tpu.memory_space<vmem>>, vector<1x8xf32>
    %34 = vector.broadcast %33 : vector<1x8xf32> to vector<64x8xf32>
    %35 = arith.addf %32, %34 : vector<64x8xf32>
    %36 = tpu.transpose %35, [1, 0] : vector<64x8xf32> -> vector<8x64xf32>
    %c0_23 = arith.constant 0 : index
    %c0_24 = arith.constant 0 : index
    %37 = vector.load %arg7[%c0_23, %c0_24] : memref<8x1xf32, #tpu.memory_space<vmem>>, vector<8x1xf32>
    %cst_25 = arith.constant dense<0.000000e+00> : vector<8xf32>
    %38 = vector.multi_reduction <add>, %36, %cst_25 [1] : vector<8x64xf32> to vector<8xf32>
    %39 = vector.shape_cast %38 : vector<8xf32> to vector<8x1xf32>
    %40 = arith.addf %37, %39 : vector<8x1xf32>
    %c0_26 = arith.constant 0 : index
    %c0_27 = arith.constant 0 : index
    %41 = vector.load %arg7[%c0_26, %c0_27] : memref<8x1xf32, #tpu.memory_space<vmem>>, vector<8x1xf32>
    tpu.vector_store %arg7[%c0_26, %c0_27], %40 {strides = array<i32>} : memref<8x1xf32, #tpu.memory_space<vmem>>, vector<8x1xf32>,
    %c0_28 = arith.constant 0 : index
    %c0_29 = arith.constant 0 : index
    %42 = vector.load %arg8[%c0_28, %c0_29] : memref<8x1xf32, #tpu.memory_space<vmem>>, vector<8x1xf32>
    %43 = arith.mulf %36, %36 : vector<8x64xf32>
    %cst_30 = arith.constant dense<0.000000e+00> : vector<8xf32>
    %44 = vector.multi_reduction <add>, %43, %cst_30 [1] : vector<8x64xf32> to vector<8xf32>
    %45 = vector.shape_cast %44 : vector<8xf32> to vector<8x1xf32>
    %46 = arith.addf %42, %45 : vector<8x1xf32>
    %c0_31 = arith.constant 0 : index
    %c0_32 = arith.constant 0 : index
    %47 = vector.load %arg8[%c0_31, %c0_32] : memref<8x1xf32, #tpu.memory_space<vmem>>, vector<8x1xf32>
    tpu.vector_store %arg8[%c0_31, %c0_32], %46 {strides = array<i32>} : memref<8x1xf32, #tpu.memory_space<vmem>>, vector<8x1xf32>,
    %c0_33 = arith.constant 0 : index
    %c0_34 = arith.constant 0 : index
    %48 = arith.index_cast %arg1 : i32 to index
    %c0_35 = arith.constant 0 : index
    %49 = vector.load %arg6[%c0_33, %c0_34, %48, %c0_35] : memref<1x8x1x64xf32, #tpu.memory_space<vmem>>, vector<1x8x1x64xf32>
    %50 = vector.shape_cast %49 : vector<1x8x1x64xf32> to vector<8x64xf32>
    %51 = vector.shape_cast %36 : vector<8x64xf32> to vector<1x8x1x64xf32>
    tpu.vector_store %arg6[%c0_33, %c0_34, %48, %c0_35], %51 {strides = array<i32>} : memref<1x8x1x64xf32, #tpu.memory_space<vmem>>, vector<1x8x1x64xf32>,
    %c0_i32_36 = arith.constant 0 : i32
    %52 = arith.cmpi eq, %arg1, %c0_i32_36 : i32
    %53 = arith.extui %52 : i1 to i32
    %c0_i32_37 = arith.constant 0 : i32
    %54 = arith.cmpi ne, %53, %c0_i32_37 : i32
    scf.if %54 {
      %c0_38 = arith.constant 0 : index
      %c0_39 = arith.constant 0 : index
      %55 = vector.load %arg7[%c0_38, %c0_39] : memref<8x1xf32, #tpu.memory_space<vmem>>, vector<8x1xf32>
      %cst_40 = arith.constant 1.562500e-02 : f32
      %56 = vector.broadcast %cst_40 : f32 to vector<8x1xf32>
      %57 = arith.mulf %55, %56 : vector<8x1xf32>
      %c0_41 = arith.constant 0 : index
      %c0_42 = arith.constant 0 : index
      %58 = vector.load %arg8[%c0_41, %c0_42] : memref<8x1xf32, #tpu.memory_space<vmem>>, vector<8x1xf32>
      %cst_43 = arith.constant 1.562500e-02 : f32
      %59 = vector.broadcast %cst_43 : f32 to vector<8x1xf32>
      %60 = arith.mulf %58, %59 : vector<8x1xf32>
      %61 = arith.mulf %57, %57 : vector<8x1xf32>
      %62 = arith.subf %60, %61 : vector<8x1xf32>
      %cst_44 = arith.constant 0.000000e+00 : f32
      %63 = vector.broadcast %cst_44 : f32 to vector<8x1xf32>
      %64 = arith.maximumf %62, %63 : vector<8x1xf32>
      %cst_45 = arith.constant 9.99999974E-6 : f32
      %65 = vector.broadcast %cst_45 : f32 to vector<8x1xf32>
      %66 = arith.addf %64, %65 : vector<8x1xf32>
      %67 = math.rsqrt %66 : vector<8x1xf32>
      %c0_46 = arith.constant 0 : index
      %c0_47 = arith.constant 0 : index
      %c0_48 = arith.constant 0 : index
      %c0_49 = arith.constant 0 : index
      %68 = vector.load %arg6[%c0_46, %c0_47, %c0_48, %c0_49] : memref<1x8x1x64xf32, #tpu.memory_space<vmem>>, vector<1x8x1x64xf32>
      %69 = vector.shape_cast %68 : vector<1x8x1x64xf32> to vector<8x64xf32>
      %70 = vector.broadcast %57 : vector<8x1xf32> to vector<8x64xf32>
      %71 = arith.subf %69, %70 : vector<8x64xf32>
      %72 = vector.broadcast %67 : vector<8x1xf32> to vector<8x64xf32>
      %73 = arith.mulf %71, %72 : vector<8x64xf32>
      %cst_50 = arith.constant 0.000000e+00 : f32
      %74 = vector.broadcast %cst_50 : f32 to vector<8x64xf32>
      %75 = arith.cmpf oge, %73, %74 : vector<8x64xf32>
      %cst_51 = arith.constant 2.000000e-01 : f32
      %76 = vector.broadcast %cst_51 : f32 to vector<8x64xf32>
      %77 = arith.mulf %76, %73 : vector<8x64xf32>
      %78 = arith.select %75, %73, %77 : vector<8x64xi1>, vector<8x64xf32>
      %c0_52 = arith.constant 0 : index
      %c0_53 = arith.constant 0 : index
      %c0_54 = arith.constant 0 : index
      %c0_55 = arith.constant 0 : index
      %79 = vector.load %arg6[%c0_52, %c0_53, %c0_54, %c0_55] : memref<1x8x1x64xf32, #tpu.memory_space<vmem>>, vector<1x8x1x64xf32>
      %80 = vector.shape_cast %79 : vector<1x8x1x64xf32> to vector<8x64xf32>
      %81 = vector.shape_cast %78 : vector<8x64xf32> to vector<1x8x1x64xf32>
      tpu.vector_store %arg6[%c0_52, %c0_53, %c0_54, %c0_55], %81 {strides = array<i32>} : memref<1x8x1x64xf32, #tpu.memory_space<vmem>>, vector<1x8x1x64xf32>,
    } else {
    }
    return
  }
  func.func @transform_0(%arg0: i32, %arg1: i32) -> (i32, i32, i32, i32) {
    %c0_i32 = arith.constant 0 : i32
    %c0_i32_0 = arith.constant 0 : i32
    %c0_i32_1 = arith.constant 0 : i32
    return %arg0, %arg1, %c0_i32, %c0_i32_0 : i32, i32, i32, i32
  }
  func.func @transform_1(%arg0: i32, %arg1: i32) -> (i32, i32, i32, i32) {
    %c1_i32 = arith.constant 1 : i32
    %0 = arith.addi %arg1, %c1_i32 : i32
    %c8_i32 = arith.constant 8 : i32
    %1 = arith.muli %0, %c8_i32 : i32
    %c0_i32 = arith.constant 0 : i32
    %c0_i32_0 = arith.constant 0 : i32
    %c0_i32_1 = arith.constant 0 : i32
    return %arg0, %1, %c0_i32, %c0_i32_0 : i32, i32, i32, i32
  }
  func.func @transform_2(%arg0: i32, %arg1: i32) -> (i32, i32, i32) {
    %c0_i32 = arith.constant 0 : i32
    %c0_i32_0 = arith.constant 0 : i32
    %c0_i32_1 = arith.constant 0 : i32
    %c0_i32_2 = arith.constant 0 : i32
    return %c0_i32, %c0_i32_0, %c0_i32_1 : i32, i32, i32
  }
  func.func @transform_3(%arg0: i32, %arg1: i32) -> (i32, i32) {
    %c0_i32 = arith.constant 0 : i32
    %c0_i32_0 = arith.constant 0 : i32
    %c0_i32_1 = arith.constant 0 : i32
    return %c0_i32, %c0_i32_0 : i32, i32
  }
  func.func @transform_4(%arg0: i32, %arg1: i32) -> (i32, i32, i32, i32) {
    %c0_i32 = arith.constant 0 : i32
    %c0_i32_0 = arith.constant 0 : i32
    %c0_i32_1 = arith.constant 0 : i32
    %c0_i32_2 = arith.constant 0 : i32
    return %arg0, %c0_i32, %c0_i32_0, %c0_i32_1 : i32, i32, i32, i32
  }
}

</mosaic_0001>

<llo_original>
// kernel: _conv_inst_norm_lrelu.1
$region0: #{_conv_inst_norm_lrelu.1}
  #allocation0 [shape = 'u32[]', space=smem, size = 0x4, offset = 0x4, fixed_abs, tag = 'smem constant byte address 0x4 - core index']
  #allocation1 [shape = 'u32[144,128]{1,0:T(1,128)}', space=vmem, size = 0x12000, scoped, tag = 'internal scratch']
  #allocation2 [shape = 'f32[8,1]{1,0:T(8,128)}', space=vmem, size = 0x1000, scoped, tag = 'scratch operand']
  #allocation3 [shape = 'f32[8,1]{1,0:T(8,128)}', space=vmem, size = 0x1000, scoped, tag = 'scratch operand']
  %s0 = inlined_call_operand.vmem [shape: bf16[2,9,9,16], index: 0, kind: input, shape index: {}, may-alias: {0,1}]
  %s1 = inlined_call_operand.vmem [shape: bf16[2,9,9,16], index: 1, kind: input, shape index: {}, may-alias: {0,1}]
  %s2 = inlined_call_operand.vmem [shape: bf16[4,16,8], index: 2, kind: input, shape index: {}]
  %s3 = inlined_call_operand.vmem [shape: f32[1,8], index: 3, kind: input, shape index: {}]
  %s4 = inlined_call_operand.vmem [shape: f32[2,8,1,64], index: 4, kind: output, shape index: {}]
  %s5 = sld [smem:[#allocation0]]
  $region57: #{_conv_inst_norm_lrelu.1} parent=0
    _
  %s7 = ssub.s32 1, %s5
  %s8 = scalar_select 0, %s7, %s5
  loop: start=0, step=1, limit=4
  $region2: #{_conv_inst_norm_lrelu.1} parent=0 // loop_pre_header
    _
  $region3: #{_conv_inst_norm_lrelu.1} parent=0 // loop_header
    %s10 = sphi 0, %s14
    %p11 = scmp.ge.s32.totalorder %s10, 4
    %s17 = sphi 0, %s29
    %s18 = sphi 0, %s25
    %s19 = sphi 0, %s17
    %s20 = sphi 0, %s18
    %s21 = sphi 0, %s19
    %s22 = sphi 0, %s20
    %s34 = sphi 0, %s36
    %s37 = sphi 0, %s34
    %s38 = sphi 0, %s37
    %s54 = sphi 0, %s38
    %s66 = sphi 0, %s68
    %s69 = sphi 0, %s66
    %s70 = sphi 0, %s69
    %s86 = sphi 0, %s70
    %s90 = sphi 0, %s90
    %s92 = sphi 0, %s90
    %s93 = sphi 0, %s92
    %s107 = sphi 0, %s93
    %s111 = sphi 0, %s111
    %s113 = sphi 0, %s111
    %s114 = sphi 0, %s113
    %s128 = sphi 0, %s114
    %s134 = sphi 0, %s136
    %s137 = sphi 0, %s134
    %s138 = sphi 0, %s137
    %s154 = sphi 0, %s138
  $region4: #{_conv_inst_norm_lrelu.1} parent=0 // loop_header_branch
    %13 = sbr.rel (%p11) target = $region8
  $region5: #{_conv_inst_norm_lrelu.1} parent=0 // loop_body
    %s15 = ssub.s32 %s10, 1
    %s16 = ssub.s32 %s10, 2
    %s23 = sadd.s32 1, %s18
    %p24 = scmp.ge.s32.totalorder %s23, 1
    %s25 = scalar_select %p24, 0, %s23
    %s26 = sadd.s32 1, %s17
    %s27 = scalar_select %p24, %s26, %s17
    %p28 = scmp.ge.s32.totalorder %s27, 2
    %s29 = scalar_select %p28, 0, %s27
    %s30 = ssub.s32 %s17, %s29
    %s31 = ssub.s32 %s18, %s25
    %s32 = sor.u32 %s30, %s31
    %p33 = scmp.eq.s32.totalorder %s32, 0
    %s35 = sadd.s32 %s34, 1
    %s36 = scalar_select %p33, %s34, %s35
    %p39 = pneg %p33
    %p40 = scmp.eq.s32.totalorder %s10, 1
    %p41 = por %p39, %p40
    %p42 = scmp.ne.s32.totalorder %s34, %s37
    %p43 = scmp.eq.s32.totalorder %s10, 0
    %p44 = por %p42, %p43
    %p45 = scmp.ne.s32.totalorder %s34, %s37
    %p46 = scmp.eq.s32.totalorder %s15, 1
    %p47 = por %p45, %p46
    %p48 = scmp.ne.s32.totalorder %s37, %s38
    %p49 = scmp.eq.s32.totalorder %s15, 0
    %p50 = por %p48, %p49
    %p51 = scmp.ne.s32.totalorder %s37, %s38
    %p52 = scmp.eq.s32.totalorder %s16, 1
    %p53 = por %p51, %p52
    %p55 = scmp.ne.s32.totalorder %s38, %s54
    %p56 = scmp.eq.s32.totalorder %s16, 0
    %p57 = por %p55, %p56
    %s58 = sadd.s32 %s18, 1
    %s59 = smul.u32 %s58, 8
    %s60 = sadd.s32 %s25, 1
    %s61 = smul.u32 %s60, 8
    %s62 = ssub.s32 %s17, %s29
    %s63 = ssub.s32 %s59, %s61
    %s64 = sor.u32 %s62, %s63
    %p65 = scmp.eq.s32.totalorder %s64, 0
    %s67 = sadd.s32 %s66, 1
    %s68 = scalar_select %p65, %s66, %s67
    %p71 = pneg %p65
    %p72 = scmp.eq.s32.totalorder %s10, 1
    %p73 = por %p71, %p72
    %p74 = scmp.ne.s32.totalorder %s66, %s69
    %p75 = scmp.eq.s32.totalorder %s10, 0
    %p76 = por %p74, %p75
    %p77 = scmp.ne.s32.totalorder %s66, %s69
    %p78 = scmp.eq.s32.totalorder %s15, 1
    %p79 = por %p77, %p78
    %p80 = scmp.ne.s32.totalorder %s69, %s70
    %p81 = scmp.eq.s32.totalorder %s15, 0
    %p82 = por %p80, %p81
    %p83 = scmp.ne.s32.totalorder %s69, %s70
    %p84 = scmp.eq.s32.totalorder %s16, 1
    %p85 = por %p83, %p84
    %p87 = scmp.ne.s32.totalorder %s70, %s86
    %p88 = scmp.eq.s32.totalorder %s16, 0
    %p89 = por %p87, %p88
    %s91 = sadd.s32 %s90, 1
    %p94 = scmp.eq.s32.totalorder %s10, 1
    %p95 = scmp.ne.s32.totalorder %s90, %s92
    %p96 = scmp.eq.s32.totalorder %s10, 0
    %p97 = por %p95, %p96
    %p98 = scmp.ne.s32.totalorder %s90, %s92
    %p99 = scmp.eq.s32.totalorder %s15, 1
    %p100 = por %p98, %p99
    %p101 = scmp.ne.s32.totalorder %s92, %s93
    %p102 = scmp.eq.s32.totalorder %s15, 0
    %p103 = por %p101, %p102
    %p104 = scmp.ne.s32.totalorder %s92, %s93
    %p105 = scmp.eq.s32.totalorder %s16, 1
    %p106 = por %p104, %p105
    %p108 = scmp.ne.s32.totalorder %s93, %s107
    %p109 = scmp.eq.s32.totalorder %s16, 0
    %p110 = por %p108, %p109
    %s112 = sadd.s32 %s111, 1
    %p115 = scmp.eq.s32.totalorder %s10, 1
    %p116 = scmp.ne.s32.totalorder %s111, %s113
    %p117 = scmp.eq.s32.totalorder %s10, 0
    %p118 = por %p116, %p117
    %p119 = scmp.ne.s32.totalorder %s111, %s113
    %p120 = scmp.eq.s32.totalorder %s15, 1
    %p121 = por %p119, %p120
    %p122 = scmp.ne.s32.totalorder %s113, %s114
    %p123 = scmp.eq.s32.totalorder %s15, 0
    %p124 = por %p122, %p123
    %p125 = scmp.ne.s32.totalorder %s113, %s114
    %p126 = scmp.eq.s32.totalorder %s16, 1
    %p127 = por %p125, %p126
    %p129 = scmp.ne.s32.totalorder %s114, %s128
    %p130 = scmp.eq.s32.totalorder %s16, 0
    %p131 = por %p129, %p130
    %s132 = ssub.s32 %s17, %s29
    %p133 = scmp.eq.s32.totalorder %s132, 0
    %s135 = sadd.s32 %s134, 1
    %s136 = scalar_select %p133, %s134, %s135
    %p139 = pneg %p133
    %p140 = scmp.eq.s32.totalorder %s10, 1
    %p141 = por %p139, %p140
    %p142 = scmp.ne.s32.totalorder %s134, %s137
    %p143 = scmp.eq.s32.totalorder %s10, 0
    %p144 = por %p142, %p143
    %p145 = scmp.ne.s32.totalorder %s134, %s137
    %p146 = scmp.eq.s32.totalorder %s15, 1
    %p147 = por %p145, %p146
    %p148 = scmp.ne.s32.totalorder %s137, %s138
    %p149 = scmp.eq.s32.totalorder %s15, 0
    %p150 = por %p148, %p149
    %p151 = scmp.ne.s32.totalorder %s137, %s138
    %p152 = scmp.eq.s32.totalorder %s16, 1
    %p153 = por %p151, %p152
    %p155 = scmp.ne.s32.totalorder %s138, %s154
    %p156 = scmp.eq.s32.totalorder %s16, 0
    %p157 = por %p155, %p156
    %p158 = scmp.le.s32.totalorder 1, %s10
    %p159 = scmp.lt.s32.totalorder %s10, 3
    %p160 = pnand %p158, %p159
    %p161 = pneg %p160
    // Predicated region
    $region9: #{_conv_inst_norm_lrelu.1} parent=5 // pred_check
      _
    $region10: #{_conv_inst_norm_lrelu.1} parent=5 // pred_check_branch
      %163 = sbr.rel (%p160) target = $region12
    $region11: #{_conv_inst_norm_lrelu.1} parent=5 // pred_region
      %s164 = ssub.s32 %s10, 1
      // Predicated region
      $region13: #{_conv_inst_norm_lrelu.1} parent=11 // pred_check
        %p165 = pneg %p103
      $region14: #{_conv_inst_norm_lrelu.1} parent=11 // pred_check_branch
        %167 = sbr.rel (%p165) target = $region16
      $region15: #{_conv_inst_norm_lrelu.1} parent=11 // pred_region
        _
      $region16: #{_conv_inst_norm_lrelu.1} parent=11 // pred_fallthru
        _
      // Predicated region
      $region17: #{_conv_inst_norm_lrelu.1} parent=11 // pred_check
        %p168 = pneg %p124
      $region18: #{_conv_inst_norm_lrelu.1} parent=11 // pred_check_branch
        %170 = sbr.rel (%p168) target = $region20
      $region19: #{_conv_inst_norm_lrelu.1} parent=11 // pred_region
        _
      $region20: #{_conv_inst_norm_lrelu.1} parent=11 // pred_fallthru
        _
    $region12: #{_conv_inst_norm_lrelu.1} parent=5 // pred_fallthru
      _
    %p171 = scmp.lt.s32.totalorder %s10, 2
    // Predicated region
    $region21: #{_conv_inst_norm_lrelu.1} parent=5 // pred_check
      %p172 = pneg %p171
    $region22: #{_conv_inst_norm_lrelu.1} parent=5 // pred_check_branch
      %174 = sbr.rel (%p172) target = $region24
    $region23: #{_conv_inst_norm_lrelu.1} parent=5 // pred_region
      // Predicated region
      $region25: #{_conv_inst_norm_lrelu.1} parent=23 // pred_check
        %p175 = pneg %p44
      $region26: #{_conv_inst_norm_lrelu.1} parent=23 // pred_check_branch
        %177 = sbr.rel (%p175) target = $region28
      $region27: #{_conv_inst_norm_lrelu.1} parent=23 // pred_region
        %s178 = smul.u32 8, %s18
        %s179 = ssub.s32 9, %s178
        %p180 = scmp.lt.s32.totalorder %s179, 8
        %s181 = scalar_select %p180, %s179, 8
        %s182 = smul.u32 64, %s181
        %s183 = smul.u32 %s182, 2
        %p184 = scmp.lt.s32.totalorder %s17, 1
        %s185 = scalar_select %p184, %s17, 1
        %p186 = scmp.lt.s32.totalorder %s178, 8
        %s187 = scalar_select %p186, %s178, 8
        %s188 = smul.addr %s187, 2
        %s189 = smul.addr %s185, 18
        %s190 = sadd.s32 %s188, %s189
        %s191 = smul.addr %s190, 4
        %s192 = scalar_lea.vmem %s0, %s191
        %s193 = smul.u32 8, %s18
        %s194 = ssub.s32 9, %s193
        %p195 = scmp.lt.s32.totalorder %s194, 8
        %s196 = scalar_select %p195, %s194, 8
        %s197 = smul.u32 64, %s196
        %s198 = smul.u32 %s197, 2
      $region28: #{_conv_inst_norm_lrelu.1} parent=23 // pred_fallthru
        _
      // Predicated region
      $region29: #{_conv_inst_norm_lrelu.1} parent=23 // pred_check
        %p199 = pneg %p76
      $region30: #{_conv_inst_norm_lrelu.1} parent=23 // pred_check_branch
        %201 = sbr.rel (%p199) target = $region32
      $region31: #{_conv_inst_norm_lrelu.1} parent=23 // pred_region
        %s202 = sadd.s32 %s18, 1
        %s203 = smul.u32 %s202, 8
        %p204 = scmp.lt.s32.totalorder %s17, 1
        %s205 = scalar_select %p204, %s17, 1
        %p206 = scmp.lt.s32.totalorder %s203, 8
        %s207 = scalar_select %p206, %s203, 8
        %s208 = smul.addr %s207, 2
        %s209 = smul.addr %s205, 18
        %s210 = sadd.s32 %s208, %s209
        %s211 = smul.addr %s210, 4
        %s212 = scalar_lea.vmem %s1, %s211
        %s213 = sadd.s32 %s18, 1
        %s214 = smul.u32 %s213, 8
      $region32: #{_conv_inst_norm_lrelu.1} parent=23 // pred_fallthru
        _
    $region24: #{_conv_inst_norm_lrelu.1} parent=5 // pred_fallthru
      _
    %p215 = scmp.le.s32.totalorder 1, %s10
    %p216 = scmp.lt.s32.totalorder %s10, 3
    %p217 = pnand %p215, %p216
    %p218 = pneg %p217
    // Predicated region
    $region33: #{_conv_inst_norm_lrelu.1} parent=5 // pred_check
      _
    $region34: #{_conv_inst_norm_lrelu.1} parent=5 // pred_check_branch
      %220 = sbr.rel (%p217) target = $region36
    $region35: #{_conv_inst_norm_lrelu.1} parent=5 // pred_region
      %s221 = ssub.s32 %s10, 1
      %s222 = smul.u32 8, %s20
      %s223 = ssub.s32 9, %s222
      %p224 = scmp.lt.s32.totalorder %s223, 8
      %s225 = scalar_select %p224, %s223, 8
      %s226 = smul.u32 64, %s225
      %s227 = smul.u32 %s226, 2
      %p228 = scmp.lt.s32.totalorder %s19, 1
      %s229 = scalar_select %p228, %s19, 1
      %p230 = scmp.lt.s32.totalorder %s222, 8
      %s231 = scalar_select %p230, %s222, 8
      %s232 = smul.addr %s231, 2
      %s233 = smul.addr %s229, 18
      %s234 = sadd.s32 %s232, %s233
      %s235 = smul.addr %s234, 4
      %s236 = scalar_lea.vmem %s0, %s235
      %p237 = pneg %p50
      %p238 = pneg %p47
      %s239 = sadd.s32 %s20, 1
      %s240 = smul.u32 %s239, 8
      %p241 = scmp.lt.s32.totalorder %s19, 1
      %s242 = scalar_select %p241, %s19, 1
      %p243 = scmp.lt.s32.totalorder %s240, 8
      %s244 = scalar_select %p243, %s240, 8
      %s245 = smul.addr %s244, 2
      %s246 = smul.addr %s242, 18
      %s247 = sadd.s32 %s245, %s246
      %s248 = smul.addr %s247, 4
      %s249 = scalar_lea.vmem %s1, %s248
      %p250 = pneg %p82
      %p251 = pneg %p79
      %p252 = pneg %p103
      %p253 = pneg %p100
      %p254 = pneg %p124
      %p255 = pneg %p121
      %p256 = pneg %p150
      %p257 = pneg %p147
      %p258 = scmp.lt.s32.totalorder %s19, 1
      %s259 = scalar_select %p258, %s19, 1
      %s260 = smul.addr %s259, 8
      %s261 = scalar_lea.vmem %s4, %s260
      %s262 = smul.u32 8, %s20
      %s263 = ssub.s32 9, %s262
      %p264 = scmp.lt.s32.totalorder %s263, 8
      %s265 = scalar_select %p264, %s263, 8
      %s266 = smul.u32 64, %s265
      %s267 = smul.u32 %s266, 2
      %p268 = scmp.lt.s32.totalorder %s19, 1
      %s269 = scalar_select %p268, %s19, 1
      %p270 = scmp.lt.s32.totalorder %s262, 8
      %s271 = scalar_select %p270, %s262, 8
      %s272 = smul.addr %s271, 2
      %s273 = smul.addr %s269, 18
      %s274 = sadd.s32 %s272, %s273
      %s275 = smul.addr %s274, 4
      %s276 = scalar_lea.vmem %s0, %s275
      %s277 = smul.u32 8, %s20
      %s278 = ssub.s32 9, %s277
      %p279 = scmp.lt.s32.totalorder %s278, 8
      %s280 = scalar_select %p279, %s278, 8
      %s281 = smul.u32 64, %s280
      %s282 = smul.u32 %s281, 2
      %s283 = sadd.s32 %s20, 1
      %s284 = smul.u32 %s283, 8
      %p285 = scmp.lt.s32.totalorder %s19, 1
      %s286 = scalar_select %p285, %s19, 1
      %p287 = scmp.lt.s32.totalorder %s284, 8
      %s288 = scalar_select %p287, %s284, 8
      %s289 = smul.addr %s288, 2
      %s290 = smul.addr %s286, 18
      %s291 = sadd.s32 %s289, %s290
      %s292 = smul.addr %s291, 4
      %s293 = scalar_lea.vmem %s1, %s292
      %s294 = sadd.s32 %s20, 1
      %s295 = smul.u32 %s294, 8
      %p296 = scmp.lt.s32.totalorder %s19, 1
      %s297 = scalar_select %p296, %s19, 1
      %s298 = smul.addr %s297, 8
      %s299 = scalar_lea.vmem %s4, %s298
      %p301 = scmp.eq.s32.totalorder %s20, 0
      // Predicated region
      $region37: #{_conv_inst_norm_lrelu.1} parent=35 // pred_check
        %p302 = pneg %p301
      $region38: #{_conv_inst_norm_lrelu.1} parent=35 // pred_check_branch
        %304 = sbr.rel (%p302) target = $region40
      $region39: #{_conv_inst_norm_lrelu.1} parent=35 // pred_region
        %vm305 = vcmask 7168
        %306 = vst.msk [vmem:[#allocation2] sm:$0xff] %vm305, 0.0
        %307 = vst.msk [vmem:[#allocation3] sm:$0xff] %vm305, 0.0
      $region40: #{_conv_inst_norm_lrelu.1} parent=35 // pred_fallthru
        _
      %v308 = vld [vmem:[%s276] sm:$0xf]
      %v309 = vld [vmem:[%s276 + $0x4] sm:$0x1]
      %v310 = vld [vmem:[%s276 + $0x8] sm:$0xf]
      %v311 = vld [vmem:[%s276 + $0xc] sm:$0x1]
      %v312 = vld [vmem:[%s276 + $0x10] sm:$0xf]
      %v313 = vld [vmem:[%s276 + $0x14] sm:$0x1]
      %v314 = vld [vmem:[%s276 + $0x18] sm:$0xf]
      %v315 = vld [vmem:[%s276 + $0x1c] sm:$0x1]
      %v316 = vld [vmem:[%s276 + $0x20] sm:$0xf]
      %v317 = vld [vmem:[%s276 + $0x24] sm:$0x1]
      %v318 = vld [vmem:[%s276 + $0x28] sm:$0xf]
      %v319 = vld [vmem:[%s276 + $0x2c] sm:$0x1]
      %v320 = vld [vmem:[%s276 + $0x30] sm:$0xf]
      %v321 = vld [vmem:[%s276 + $0x34] sm:$0x1]
      %v322 = vld [vmem:[%s276 + $0x38] sm:$0xf]
      %v323 = vld [vmem:[%s276 + $0x3c] sm:$0x1]
      %v324 = vld [vmem:[%s293] sm:$0xf]
      %v325 = vld [vmem:[%s293 + $0x4] sm:$0x1]
      %v326 = vld [vmem:[%s2] sm:$0xf]
      %v327 = vld [vmem:[%s2 + $0x4] sm:$0xf]
      %vm328 = vsmask.f32 3328
      %vm329 = vsmask.f32 7440
      %vm330 = vmor %vm328, %vm329
      %v332 = vshrl.u32 %v308, 16
      %v334 = vrot.slane %v332, 4
      %v335 = vshll.u32 %v308, 16
      %v337 = vrot.slane %v335, 5
      %v338 = vor.u32 %v334, %v337
      %v339 = vrot.slane %v338, 4
      %v341 = vshll.u32 %v309, 16
      %v343 = vrot.slane %v341, 5
      %v344 = vsel %vm330, %v339, %v343
      %v346 = vshrl.u32 %v310, 16
      %v348 = vrot.slane %v346, 4
      %v349 = vshll.u32 %v310, 16
      %v351 = vrot.slane %v349, 5
      %v352 = vor.u32 %v348, %v351
      %v353 = vrot.slane %v352, 4
      %v355 = vshll.u32 %v311, 16
      %v357 = vrot.slane %v355, 5
      %v358 = vsel %vm330, %v353, %v357
      %v360 = vshrl.u32 %v312, 16
      %v362 = vrot.slane %v360, 4
      %v363 = vshll.u32 %v312, 16
      %v365 = vrot.slane %v363, 5
      %v366 = vor.u32 %v362, %v365
      %v367 = vrot.slane %v366, 4
      %v369 = vshll.u32 %v313, 16
      %v371 = vrot.slane %v369, 5
      %v372 = vsel %vm330, %v367, %v371
      %v374 = vshrl.u32 %v314, 16
      %v376 = vrot.slane %v374, 4
      %v377 = vshll.u32 %v314, 16
      %v379 = vrot.slane %v377, 5
      %v380 = vor.u32 %v376, %v379
      %v381 = vrot.slane %v380, 4
      %v383 = vshll.u32 %v315, 16
      %v385 = vrot.slane %v383, 5
      %v386 = vsel %vm330, %v381, %v385
      %v388 = vshrl.u32 %v316, 16
      %v390 = vrot.slane %v388, 4
      %v391 = vshll.u32 %v316, 16
      %v393 = vrot.slane %v391, 5
      %v394 = vor.u32 %v390, %v393
      %v395 = vrot.slane %v394, 4
      %v397 = vshll.u32 %v317, 16
      %v399 = vrot.slane %v397, 5
      %v400 = vsel %vm330, %v395, %v399
      %v402 = vshrl.u32 %v318, 16
      %v404 = vrot.slane %v402, 4
      %v405 = vshll.u32 %v318, 16
      %v407 = vrot.slane %v405, 5
      %v408 = vor.u32 %v404, %v407
      %v409 = vrot.slane %v408, 4
      %v411 = vshll.u32 %v319, 16
      %v413 = vrot.slane %v411, 5
      %v414 = vsel %vm330, %v409, %v413
      %v416 = vshrl.u32 %v320, 16
      %v418 = vrot.slane %v416, 4
      %v419 = vshll.u32 %v320, 16
      %v421 = vrot.slane %v419, 5
      %v422 = vor.u32 %v418, %v421
      %v423 = vrot.slane %v422, 4
      %v425 = vshll.u32 %v321, 16
      %v427 = vrot.slane %v425, 5
      %v428 = vsel %vm330, %v423, %v427
      %v430 = vshrl.u32 %v322, 16
      %v432 = vrot.slane %v430, 4
      %v433 = vshll.u32 %v322, 16
      %v435 = vrot.slane %v433, 5
      %v436 = vor.u32 %v432, %v435
      %v437 = vrot.slane %v436, 4
      %v439 = vshll.u32 %v323, 16
      %v441 = vrot.slane %v439, 5
      %v442 = vsel %vm330, %v437, %v441
      %s443 = scalar_lea.vmem %s2, 8
      %v444 = vld [vmem:[%s443] sm:$0xf]
      %v445 = vld [vmem:[%s443 + $0x4] sm:$0xf]
      %v446 = vunpack.c.l.b16 %v344
      %v447 = vunpack.c.l.b16 %v358
      %v448 = vunpack.c.l.b16 %v372
      %v449 = vunpack.c.l.b16 %v386
      %v450 = vunpack.c.l.b16 %v400
      %v451 = vunpack.c.l.b16 %v414
      %v452 = vunpack.c.l.b16 %v428
      %v453 = vunpack.c.l.b16 %v442
      %v454 = vpack.c.b16 %v447, %v446
      %v455 = vpack.c.b16 %v449, %v448
      %v456 = vpack.c.b16 %v451, %v450
      %v457 = vpack.c.b16 %v453, %v452
      %v460 = vunpack.c.l.b16 %v444
      %v461 = vunpack.c.l.b16 %v445
      %v462 = vpack.c.b16 %v461, %v460
      %vm464 = vcmask 130048
      %v466 = vsel %vm464, %v454, 0
      %v469 = vsel %vm464, %v455, 0
      %v472 = vsel %vm464, %v456, 0
      %v475 = vsel %vm464, %v457, 0
      %477 = vmatprep.subr.bf16.mxu0 0
      %478 = vmatpush1.bf16.msra.mxu0 0
      %479 = vmatprep.subr.bf16.mxu0 0
      %480 = vmatpush1.bf16.msra.mxu0 0
      %481 = vmatprep.subr.bf16.mxu0 0
      %482 = vmatpush1.bf16.msra.mxu0 0
      %483 = vmatprep.subr.bf16.mxu0 0
      %484 = vmatpush1.bf16.msra.mxu0 0
      %485 = vmatprep.subr.bf16.mxu0 0
      %486 = vmatpush1.bf16.msra.mxu0 0
      %487 = vmatprep.subr.bf16.mxu0 0
      %488 = vmatpush1.bf16.msra.mxu0 0
      %489 = vmatprep.subr.bf16.mxu0 0
      %490 = vmatpush1.bf16.msra.mxu0 0
      %491 = vmatprep.subr.bf16.mxu0 0
      %492 = vmatpush1.bf16.msra.mxu0 %v462
      %493 = vmatprep.subr.bf16.mxu0 0
      %494 = vmatpush2.bf16.msra.mxu0 0
      %495 = vmatprep.subr.bf16.mxu0 0
      %496 = vmatpush2.bf16.msra.mxu0 0
      %497 = vmatprep.subr.bf16.mxu0 0
      %498 = vmatpush2.bf16.msra.mxu0 0
      %499 = vmatprep.subr.bf16.mxu0 0
      %500 = vmatpush2.bf16.msra.mxu0 0
      %501 = vmatprep.subr.bf16.mxu0 0
      %502 = vmatpush2.bf16.msra.mxu0 0
      %503 = vmatprep.subr.bf16.mxu0 0
      %504 = vmatpush2.bf16.msra.mxu0 0
      %505 = vmatprep.subr.bf16.mxu0 0
      %506 = vmatpush2.bf16.msra.mxu0 0
      %507 = vmatprep.subr.bf16.mxu0 0
      %508 = vmatpush2.bf16.msra.mxu0 0
      %509 = vmatprep.mubr.bf16.mxu0 0
      %510 = vmatmul.mubr.bf16.gmra.mxu0 %v466
      %v511 = vpop.f32.mrf.mxu0
      %v512 = vadd.f32 0.0, %v511
      %v513 = vpop.f32.mrf.mxu0
      %v514 = vpop.f32.mrf.mxu0
      %v515 = vadd.f32 0.0, %v514
      %v516 = vpop.f32.mrf.mxu0
      %517 = vmatprep.mubr.bf16.mxu0 0
      %518 = vmatmul.mubr.bf16.gmra.mxu0 %v469
      %v519 = vpop.f32.mrf.mxu0
      %v520 = vadd.f32 0.0, %v519
      %v521 = vpop.f32.mrf.mxu0
      %v522 = vpop.f32.mrf.mxu0
      %v523 = vadd.f32 0.0, %v522
      %v524 = vpop.f32.mrf.mxu0
      %525 = vmatprep.mubr.bf16.mxu0 0
      %526 = vmatmul.mubr.bf16.gmra.mxu0 %v472
      %v527 = vpop.f32.mrf.mxu0
      %v528 = vadd.f32 0.0, %v527
      %v529 = vpop.f32.mrf.mxu0
      %v530 = vpop.f32.mrf.mxu0
      %v531 = vadd.f32 0.0, %v530
      %v532 = vpop.f32.mrf.mxu0
      %533 = vmatprep.mubr.bf16.mxu0 0
      %534 = vmatmul.mubr.bf16.gmra.mxu0 %v475
      %v535 = vpop.f32.mrf.mxu0
      %v536 = vadd.f32 0.0, %v535
      %v537 = vpop.f32.mrf.mxu0
      %v538 = vpop.f32.mrf.mxu0
      %v539 = vadd.f32 0.0, %v538
      %v540 = vpop.f32.mrf.mxu0
      %541 = vdwg.mxu0
      %v550 = vunpack.c.l.b16 %v308
      %v551 = vunpack.c.l.b16 %v310
      %v552 = vunpack.c.l.b16 %v312
      %v553 = vunpack.c.l.b16 %v314
      %v554 = vunpack.c.l.b16 %v316
      %v555 = vunpack.c.l.b16 %v318
      %v556 = vunpack.c.l.b16 %v320
      %v557 = vunpack.c.l.b16 %v322
      %v558 = vpack.c.b16 %v551, %v550
      %v559 = vpack.c.b16 %v553, %v552
      %v560 = vpack.c.b16 %v555, %v554
      %v561 = vpack.c.b16 %v557, %v556
      %v564 = vunpack.c.l.b16 %v326
      %v565 = vunpack.c.l.b16 %v327
      %v566 = vpack.c.b16 %v565, %v564
      %v569 = vsel %vm464, %v558, 0
      %v572 = vsel %vm464, %v559, 0
      %v575 = vsel %vm464, %v560, 0
      %v578 = vsel %vm464, %v561, 0
      %580 = vmatprep.subr.bf16.mxu0 0
      %581 = vmatpush1.bf16.msra.mxu0 0
      %582 = vmatprep.subr.bf16.mxu0 0
      %583 = vmatpush1.bf16.msra.mxu0 0
      %584 = vmatprep.subr.bf16.mxu0 0
      %585 = vmatpush1.bf16.msra.mxu0 0
      %586 = vmatprep.subr.bf16.mxu0 0
      %587 = vmatpush1.bf16.msra.mxu0 0
      %588 = vmatprep.subr.bf16.mxu0 0
      %589 = vmatpush1.bf16.msra.mxu0 0
      %590 = vmatprep.subr.bf16.mxu0 0
      %591 = vmatpush1.bf16.msra.mxu0 0
      %592 = vmatprep.subr.bf16.mxu0 0
      %593 = vmatpush1.bf16.msra.mxu0 0
      %594 = vmatprep.subr.bf16.mxu0 0
      %595 = vmatpush1.bf16.msra.mxu0 %v566
      %596 = vmatprep.subr.bf16.mxu0 0
      %597 = vmatpush2.bf16.msra.mxu0 0
      %598 = vmatprep.subr.bf16.mxu0 0
      %599 = vmatpush2.bf16.msra.mxu0 0
      %600 = vmatprep.subr.bf16.mxu0 0
      %601 = vmatpush2.bf16.msra.mxu0 0
      %602 = vmatprep.subr.bf16.mxu0 0
      %603 = vmatpush2.bf16.msra.mxu0 0
      %604 = vmatprep.subr.bf16.mxu0 0
      %605 = vmatpush2.bf16.msra.mxu0 0
      %606 = vmatprep.subr.bf16.mxu0 0
      %607 = vmatpush2.bf16.msra.mxu0 0
      %608 = vmatprep.subr.bf16.mxu0 0
      %609 = vmatpush2.bf16.msra.mxu0 0
      %610 = vmatprep.subr.bf16.mxu0 0
      %611 = vmatpush2.bf16.msra.mxu0 0
      %612 = vmatprep.mubr.bf16.mxu0 0
      %613 = vmatmul.mubr.bf16.gmra.mxu0 %v569
      %v614 = vpop.f32.mrf.mxu0
      %v615 = vadd.f32 %v512, %v614
      %v616 = vpop.f32.mrf.mxu0
      %v617 = vpop.f32.mrf.mxu0
      %v618 = vadd.f32 %v515, %v617
      %v619 = vpop.f32.mrf.mxu0
      %620 = vmatprep.mubr.bf16.mxu0 0
      %621 = vmatmul.mubr.bf16.gmra.mxu0 %v572
      %v622 = vpop.f32.mrf.mxu0
      %v623 = vadd.f32 %v520, %v622
      %v624 = vpop.f32.mrf.mxu0
      %v625 = vpop.f32.mrf.mxu0
      %v626 = vadd.f32 %v523, %v625
      %v627 = vpop.f32.mrf.mxu0
      %628 = vmatprep.mubr.bf16.mxu0 0
      %629 = vmatmul.mubr.bf16.gmra.mxu0 %v575
      %v630 = vpop.f32.mrf.mxu0
      %v631 = vadd.f32 %v528, %v630
      %v632 = vpop.f32.mrf.mxu0
      %v633 = vpop.f32.mrf.mxu0
      %v634 = vadd.f32 %v531, %v633
      %v635 = vpop.f32.mrf.mxu0
      %636 = vmatprep.mubr.bf16.mxu0 0
      %637 = vmatmul.mubr.bf16.gmra.mxu0 %v578
      %v638 = vpop.f32.mrf.mxu0
      %v639 = vadd.f32 %v536, %v638
      %v640 = vpop.f32.mrf.mxu0
      %v641 = vpop.f32.mrf.mxu0
      %v642 = vadd.f32 %v539, %v641
      %v643 = vpop.f32.mrf.mxu0
      %644 = vdwg.mxu0
      %s645 = scalar_lea.vmem %s2, 16
      %v646 = vld [vmem:[%s645] sm:$0xf]
      %v647 = vld [vmem:[%s645 + $0x4] sm:$0xf]
      %v649 = vunpack.c.l.b16 %v324
      %v650 = vpack.c.b16 %v552, %v551
      %v651 = vpack.c.b16 %v554, %v553
      %v652 = vpack.c.b16 %v556, %v555
      %v653 = vpack.c.b16 %v649, %v557
      %v656 = vunpack.c.l.b16 %v646
      %v657 = vunpack.c.l.b16 %v647
      %v658 = vpack.c.b16 %v657, %v656
      %v661 = vsel %vm464, %v650, 0
      %v664 = vsel %vm464, %v651, 0
      %v667 = vsel %vm464, %v652, 0
      %v670 = vsel %vm464, %v653, 0
      %672 = vmatprep.subr.bf16.mxu0 0
      %673 = vmatpush1.bf16.msra.mxu0 0
      %674 = vmatprep.subr.bf16.mxu0 0
      %675 = vmatpush1.bf16.msra.mxu0 0
      %676 = vmatprep.subr.bf16.mxu0 0
      %677 = vmatpush1.bf16.msra.mxu0 0
      %678 = vmatprep.subr.bf16.mxu0 0
      %679 = vmatpush1.bf16.msra.mxu0 0
      %680 = vmatprep.subr.bf16.mxu0 0
      %681 = vmatpush1.bf16.msra.mxu0 0
      %682 = vmatprep.subr.bf16.mxu0 0
      %683 = vmatpush1.bf16.msra.mxu0 0
      %684 = vmatprep.subr.bf16.mxu0 0
      %685 = vmatpush1.bf16.msra.mxu0 0
      %686 = vmatprep.subr.bf16.mxu0 0
      %687 = vmatpush1.bf16.msra.mxu0 %v658
      %688 = vmatprep.subr.bf16.mxu0 0
      %689 = vmatpush2.bf16.msra.mxu0 0
      %690 = vmatprep.subr.bf16.mxu0 0
      %691 = vmatpush2.bf16.msra.mxu0 0
      %692 = vmatprep.subr.bf16.mxu0 0
      %693 = vmatpush2.bf16.msra.mxu0 0
      %694 = vmatprep.subr.bf16.mxu0 0
      %695 = vmatpush2.bf16.msra.mxu0 0
      %696 = vmatprep.subr.bf16.mxu0 0
      %697 = vmatpush2.bf16.msra.mxu0 0
      %698 = vmatprep.subr.bf16.mxu0 0
      %699 = vmatpush2.bf16.msra.mxu0 0
      %700 = vmatprep.subr.bf16.mxu0 0
      %701 = vmatpush2.bf16.msra.mxu0 0
      %702 = vmatprep.subr.bf16.mxu0 0
      %703 = vmatpush2.bf16.msra.mxu0 0
      %704 = vmatprep.mubr.bf16.mxu0 0
      %705 = vmatmul.mubr.bf16.gmra.mxu0 %v661
      %v706 = vpop.f32.mrf.mxu0
      %v707 = vadd.f32 0.0, %v706
      %v708 = vpop.f32.mrf.mxu0
      %v709 = vpop.f32.mrf.mxu0
      %v710 = vadd.f32 0.0, %v709
      %v711 = vpop.f32.mrf.mxu0
      %712 = vmatprep.mubr.bf16.mxu0 0
      %713 = vmatmul.mubr.bf16.gmra.mxu0 %v664
      %v714 = vpop.f32.mrf.mxu0
      %v715 = vadd.f32 0.0, %v714
      %v716 = vpop.f32.mrf.mxu0
      %v717 = vpop.f32.mrf.mxu0
      %v718 = vadd.f32 0.0, %v717
      %v719 = vpop.f32.mrf.mxu0
      %720 = vmatprep.mubr.bf16.mxu0 0
      %721 = vmatmul.mubr.bf16.gmra.mxu0 %v667
      %v722 = vpop.f32.mrf.mxu0
      %v723 = vadd.f32 0.0, %v722
      %v724 = vpop.f32.mrf.mxu0
      %v725 = vpop.f32.mrf.mxu0
      %v726 = vadd.f32 0.0, %v725
      %v727 = vpop.f32.mrf.mxu0
      %728 = vmatprep.mubr.bf16.mxu0 0
      %729 = vmatmul.mubr.bf16.gmra.mxu0 %v670
      %v730 = vpop.f32.mrf.mxu0
      %v731 = vadd.f32 0.0, %v730
      %v732 = vpop.f32.mrf.mxu0
      %v733 = vpop.f32.mrf.mxu0
      %v734 = vadd.f32 0.0, %v733
      %v735 = vpop.f32.mrf.mxu0
      %736 = vdwg.mxu0
      %v737 = vadd.f32 %v615, %v707
      %v738 = vadd.f32 %v618, %v710
      %v739 = vadd.f32 %v623, %v715
      %v740 = vadd.f32 %v626, %v718
      %v741 = vadd.f32 %v631, %v723
      %v742 = vadd.f32 %v634, %v726
      %v743 = vadd.f32 %v639, %v731
      %v744 = vadd.f32 %v642, %v734
      %v746 = vshrl.u32 %v324, 16
      %v748 = vrot.slane %v746, 4
      %v749 = vshll.u32 %v324, 16
      %v751 = vrot.slane %v749, 5
      %v752 = vor.u32 %v748, %v751
      %v753 = vrot.slane %v752, 4
      %v755 = vshll.u32 %v325, 16
      %v757 = vrot.slane %v755, 5
      %v758 = vsel %vm330, %v753, %v757
      %s759 = scalar_lea.vmem %s2, 24
      %v760 = vld [vmem:[%s759] sm:$0xf]
      %v761 = vld [vmem:[%s759 + $0x4] sm:$0xf]
      %v762 = vunpack.c.l.b16 %v758
      %v763 = vpack.c.b16 %v448, %v447
      %v764 = vpack.c.b16 %v450, %v449
      %v765 = vpack.c.b16 %v452, %v451
      %v766 = vpack.c.b16 %v762, %v453
      %v769 = vunpack.c.l.b16 %v760
      %v770 = vunpack.c.l.b16 %v761
      %v771 = vpack.c.b16 %v770, %v769
      %v774 = vsel %vm464, %v763, 0
      %v777 = vsel %vm464, %v764, 0
      %v780 = vsel %vm464, %v765, 0
      %v783 = vsel %vm464, %v766, 0
      %785 = vmatprep.subr.bf16.mxu0 0
      %786 = vmatpush1.bf16.msra.mxu0 0
      %787 = vmatprep.subr.bf16.mxu0 0
      %788 = vmatpush1.bf16.msra.mxu0 0
      %789 = vmatprep.subr.bf16.mxu0 0
      %790 = vmatpush1.bf16.msra.mxu0 0
      %791 = vmatprep.subr.bf16.mxu0 0
      %792 = vmatpush1.bf16.msra.mxu0 0
      %793 = vmatprep.subr.bf16.mxu0 0
      %794 = vmatpush1.bf16.msra.mxu0 0
      %795 = vmatprep.subr.bf16.mxu0 0
      %796 = vmatpush1.bf16.msra.mxu0 0
      %797 = vmatprep.subr.bf16.mxu0 0
      %798 = vmatpush1.bf16.msra.mxu0 0
      %799 = vmatprep.subr.bf16.mxu0 0
      %800 = vmatpush1.bf16.msra.mxu0 %v771
      %801 = vmatprep.subr.bf16.mxu0 0
      %802 = vmatpush2.bf16.msra.mxu0 0
      %803 = vmatprep.subr.bf16.mxu0 0
      %804 = vmatpush2.bf16.msra.mxu0 0
      %805 = vmatprep.subr.bf16.mxu0 0
      %806 = vmatpush2.bf16.msra.mxu0 0
      %807 = vmatprep.subr.bf16.mxu0 0
      %808 = vmatpush2.bf16.msra.mxu0 0
      %809 = vmatprep.subr.bf16.mxu0 0
      %810 = vmatpush2.bf16.msra.mxu0 0
      %811 = vmatprep.subr.bf16.mxu0 0
      %812 = vmatpush2.bf16.msra.mxu0 0
      %813 = vmatprep.subr.bf16.mxu0 0
      %814 = vmatpush2.bf16.msra.mxu0 0
      %815 = vmatprep.subr.bf16.mxu0 0
      %816 = vmatpush2.bf16.msra.mxu0 0
      %817 = vmatprep.mubr.bf16.mxu0 0
      %818 = vmatmul.mubr.bf16.gmra.mxu0 %v774
      %v819 = vpop.f32.mrf.mxu0
      %v820 = vadd.f32 0.0, %v819
      %v821 = vpop.f32.mrf.mxu0
      %v822 = vpop.f32.mrf.mxu0
      %v823 = vadd.f32 0.0, %v822
      %v824 = vpop.f32.mrf.mxu0
      %825 = vmatprep.mubr.bf16.mxu0 0
      %826 = vmatmul.mubr.bf16.gmra.mxu0 %v777
      %v827 = vpop.f32.mrf.mxu0
      %v828 = vadd.f32 0.0, %v827
      %v829 = vpop.f32.mrf.mxu0
      %v830 = vpop.f32.mrf.mxu0
      %v831 = vadd.f32 0.0, %v830
      %v832 = vpop.f32.mrf.mxu0
      %833 = vmatprep.mubr.bf16.mxu0 0
      %834 = vmatmul.mubr.bf16.gmra.mxu0 %v780
      %v835 = vpop.f32.mrf.mxu0
      %v836 = vadd.f32 0.0, %v835
      %v837 = vpop.f32.mrf.mxu0
      %v838 = vpop.f32.mrf.mxu0
      %v839 = vadd.f32 0.0, %v838
      %v840 = vpop.f32.mrf.mxu0
      %841 = vmatprep.mubr.bf16.mxu0 0
      %842 = vmatmul.mubr.bf16.gmra.mxu0 %v783
      %v843 = vpop.f32.mrf.mxu0
      %v844 = vadd.f32 0.0, %v843
      %v845 = vpop.f32.mrf.mxu0
      %v846 = vpop.f32.mrf.mxu0
      %v847 = vadd.f32 0.0, %v846
      %v848 = vpop.f32.mrf.mxu0
      %849 = vdwg.mxu0
      %v850 = vadd.f32 %v737, %v820
      %v851 = vadd.f32 %v738, %v823
      %v852 = vadd.f32 %v739, %v828
      %v853 = vadd.f32 %v740, %v831
      %v854 = vadd.f32 %v741, %v836
      %v855 = vadd.f32 %v742, %v839
      %v856 = vadd.f32 %v743, %v844
      %v857 = vadd.f32 %v744, %v847
      %v858 = vld [vmem:[%s3] sm:$0x1]
      %v860 = vlaneseq
      %v861 = vshrl.u32 %v860, 7
      %v862 = vsub.s32 0, %v861
      %v863 = vrot.slane %v858, %v862
      %v865 = vadd.f32 %v850, %v863
      %v866 = vadd.f32 %v851, %v863
      %v867 = vadd.f32 %v852, %v863
      %v868 = vadd.f32 %v853, %v863
      %v869 = vadd.f32 %v854, %v863
      %v870 = vadd.f32 %v855, %v863
      %v871 = vadd.f32 %v856, %v863
      %v872 = vadd.f32 %v857, %v863
      %873 = vxpose.xlu0.b32.start [1/16] %v865, 128
      %874 = vxpose.xlu0.b32.cont [2/16] %v866, 128
      %875 = vxpose.xlu0.b32.cont [3/16] %v867, 128
      %876 = vxpose.xlu0.b32.cont [4/16] %v868, 128
      %877 = vxpose.xlu0.b32.cont [5/16] %v869, 128
      %878 = vxpose.xlu0.b32.cont [6/16] %v870, 128
      %879 = vxpose.xlu0.b32.cont [7/16] %v871, 128
      %880 = vxpose.xlu0.b32.cont [8/16] %v872, 128
      %881 = vxpose.xlu0.b32.cont [9/16] 0.0, 128
      %882 = vxpose.xlu0.b32.cont [10/16] 0.0, 128
      %883 = vxpose.xlu0.b32.cont [11/16] 0.0, 128
      %884 = vxpose.xlu0.b32.cont [12/16] 0.0, 128
      %885 = vxpose.xlu0.b32.cont [13/16] 0.0, 128
      %886 = vxpose.xlu0.b32.cont [14/16] 0.0, 128
      %887 = vxpose.xlu0.b32.cont [15/16] 0.0, 128
      %888 = vxpose.xlu0.b32.end [16/16] 0.0, 128
      %v889 = vpop.trf.xlu0
      %v890 = vpop.trf.xlu0
      %v891 = vpop.trf.xlu0
      %v892 = vpop.trf.xlu0
      %v893 = vpop.trf.xlu0
      %v894 = vpop.trf.xlu0
      %v895 = vpop.trf.xlu0
      %v896 = vpop.trf.xlu0
      %v897 = vpop.trf.xlu0
      %v898 = vpop.trf.xlu0
      %v899 = vpop.trf.xlu0
      %v900 = vpop.trf.xlu0
      %v901 = vpop.trf.xlu0
      %v902 = vpop.trf.xlu0
      %v903 = vpop.trf.xlu0
      %v904 = vpop.trf.xlu0
      %v905 = vld [vmem:[#allocation2] sm:$0xff]
      %vm906 = vcmask 523264
      %v907 = vsel %vm906, %v889, 0.0
      %908 = vadd.xlane.f32.xlu0 %v907
      %v909 = vpop.xlane.xlu0 %908
      %v910 = vadd.f32 %v905, %v909
      %vm911 = vcmask 7168
      %912 = vst.msk [vmem:[#allocation2] sm:$0xff] %vm911, %v910
      %v913 = vld [vmem:[#allocation3] sm:$0xff]
      %v914 = vmul.f32 %v889, %v889
      %v915 = vsel %vm906, %v914, 0.0
      %916 = vadd.xlane.f32.xlu0 %v915
      %v917 = vpop.xlane.xlu0 %916
      %v918 = vadd.f32 %v913, %v917
      %919 = vst.msk [vmem:[#allocation3] sm:$0xff] %vm911, %v918
      %v921 = vcombine.high %v889, %v889
      %v923 = vunpack.c.l.s4 1966171168
      %v924 = vunpack.c.0.s8 %v923
      %v925 = vlaneseq
      %v926 = vshrl.u32 %v925, 7
      %v927 = vsub.s32 %v924, %v926
      %v928 = vrot.slane %v889, %v927
      %v930 = vunpack.c.l.s4 1966171168
      %v931 = vunpack.c.0.s8 %v930
      %v932 = vlaneseq
      %v933 = vshrl.u32 %v932, 7
      %v934 = vsub.s32 %v931, %v933
      %v935 = vrot.slane %v921, %v934
      %v936 = vcombine.high %v928, %v928
      %v937 = vcombine.high %v935, %v935
      %v939 = vunpack.c.l.s4 1966171168
      %v940 = vunpack.c.0.s8 %v939
      %v941 = vlaneseq
      %v942 = vshrl.u32 %v941, 7
      %v943 = vsub.s32 %v940, %v942
      %v944 = vrot.slane %v928, %v943
      %v946 = vunpack.c.l.s4 1966171168
      %v947 = vunpack.c.0.s8 %v946
      %v948 = vlaneseq
      %v949 = vshrl.u32 %v948, 7
      %v950 = vsub.s32 %v947, %v949
      %v951 = vrot.slane %v935, %v950
      %v953 = vunpack.c.l.s4 1966171168
      %v954 = vunpack.c.0.s8 %v953
      %v955 = vlaneseq
      %v956 = vshrl.u32 %v955, 7
      %v957 = vsub.s32 %v954, %v956
      %v958 = vrot.slane %v936, %v957
      %v960 = vunpack.c.l.s4 1966171168
      %v961 = vunpack.c.0.s8 %v960
      %v962 = vlaneseq
      %v963 = vshrl.u32 %v962, 7
      %v964 = vsub.s32 %v961, %v963
      %v965 = vrot.slane %v937, %v964
      %v966 = vcombine.high %v944, %v944
      %v967 = vcombine.high %v951, %v951
      %v968 = vcombine.high %v958, %v958
      %v969 = vcombine.high %v965, %v965
      %s978 = scalar_lea.vmem %s299, %s20
      %vm979 = vcmask 516096
      %980 = vst.msk [vmem:[%s978] sm:$0x1] %vm979, %v944
      %981 = vst.msk [vmem:[%s978 + $0x1] sm:$0x1] %vm979, %v958
      %982 = vst.msk [vmem:[%s978 + $0x2] sm:$0x1] %vm979, %v966
      %983 = vst.msk [vmem:[%s978 + $0x3] sm:$0x1] %vm979, %v968
      %984 = vst.msk [vmem:[%s978 + $0x4] sm:$0x1] %vm979, %v951
      %985 = vst.msk [vmem:[%s978 + $0x5] sm:$0x1] %vm979, %v965
      %986 = vst.msk [vmem:[%s978 + $0x6] sm:$0x1] %vm979, %v967
      %987 = vst.msk [vmem:[%s978 + $0x7] sm:$0x1] %vm979, %v969
      // Predicated region
      $region41: #{_conv_inst_norm_lrelu.1} parent=35 // pred_check
        %p988 = pneg %p301
      $region42: #{_conv_inst_norm_lrelu.1} parent=35 // pred_check_branch
        %990 = sbr.rel (%p988) target = $region44
      $region43: #{_conv_inst_norm_lrelu.1} parent=35 // pred_region
        %v991 = vld [vmem:[#allocation2] sm:$0xff]
        %v992 = vmul.f32 %v991, 0.015625
        %v993 = vld [vmem:[#allocation3] sm:$0xff]
        %v994 = vmul.f32 %v993, 0.015625
        %v995 = vmul.f32 %v992, %v992
        %v996 = vsub.f32 %v994, %v995
        %v997 = vmax.f32 %v996, 0.0
        %v998 = vadd.f32 %v997, 1e-05
        %v999 = vrsqrt.pop %v998
        %v1000 = vld [vmem:[%s299] sm:$0x1]
        %v1001 = vld [vmem:[%s299 + $0x1] sm:$0x1]
        %v1002 = vld [vmem:[%s299 + $0x2] sm:$0x1]
        %v1003 = vld [vmem:[%s299 + $0x3] sm:$0x1]
        %v1004 = vld [vmem:[%s299 + $0x4] sm:$0x1]
        %v1005 = vld [vmem:[%s299 + $0x5] sm:$0x1]
        %v1006 = vld [vmem:[%s299 + $0x6] sm:$0x1]
        %v1007 = vld [vmem:[%s299 + $0x7] sm:$0x1]
        %1009 = vset.pattern.permute.xlu0 0
        %1010 = vperm.xlu0 %1009, %v992
        %v1011 = vpop.permute.xlu0 %1010
        %v1012 = vlaneseq
        %v1013 = vshrl.u32 %v1012, 7
        %v1014 = vsub.s32 0, %v1013
        %v1015 = vrot.slane %v1011, %v1014
        %v1016 = vlaneseq
        %v1017 = vshrl.u32 %v1016, 7
        %v1018 = vsub.s32 1, %v1017
        %v1019 = vrot.slane %v1011, %v1018
        %v1020 = vlaneseq
        %v1021 = vshrl.u32 %v1020, 7
        %v1022 = vsub.s32 2, %v1021
        %v1023 = vrot.slane %v1011, %v1022
        %v1024 = vlaneseq
        %v1025 = vshrl.u32 %v1024, 7
        %v1026 = vsub.s32 3, %v1025
        %v1027 = vrot.slane %v1011, %v1026
        %v1028 = vlaneseq
        %v1029 = vshrl.u32 %v1028, 7
        %v1030 = vsub.s32 4, %v1029
        %v1031 = vrot.slane %v1011, %v1030
        %v1032 = vlaneseq
        %v1033 = vshrl.u32 %v1032, 7
        %v1034 = vsub.s32 5, %v1033
        %v1035 = vrot.slane %v1011, %v1034
        %v1036 = vlaneseq
        %v1037 = vshrl.u32 %v1036, 7
        %v1038 = vsub.s32 6, %v1037
        %v1039 = vrot.slane %v1011, %v1038
        %v1040 = vlaneseq
        %v1041 = vshrl.u32 %v1040, 7
        %v1042 = vsub.s32 7, %v1041
        %v1043 = vrot.slane %v1011, %v1042
        %v1052 = vsub.f32 %v1000, %v1015
        %v1053 = vsub.f32 %v1001, %v1019
        %v1054 = vsub.f32 %v1002, %v1023
        %v1055 = vsub.f32 %v1003, %v1027
        %v1056 = vsub.f32 %v1004, %v1031
        %v1057 = vsub.f32 %v1005, %v1035
        %v1058 = vsub.f32 %v1006, %v1039
        %v1059 = vsub.f32 %v1007, %v1043
        %1061 = vset.pattern.permute.xlu0 0
        %1062 = vperm.xlu0 %1061, %v999
        %v1063 = vpop.permute.xlu0 %1062
        %v1064 = vlaneseq
        %v1065 = vshrl.u32 %v1064, 7
        %v1066 = vsub.s32 0, %v1065
        %v1067 = vrot.slane %v1063, %v1066
        %v1068 = vlaneseq
        %v1069 = vshrl.u32 %v1068, 7
        %v1070 = vsub.s32 1, %v1069
        %v1071 = vrot.slane %v1063, %v1070
        %v1072 = vlaneseq
        %v1073 = vshrl.u32 %v1072, 7
        %v1074 = vsub.s32 2, %v1073
        %v1075 = vrot.slane %v1063, %v1074
        %v1076 = vlaneseq
        %v1077 = vshrl.u32 %v1076, 7
        %v1078 = vsub.s32 3, %v1077
        %v1079 = vrot.slane %v1063, %v1078
        %v1080 = vlaneseq
        %v1081 = vshrl.u32 %v1080, 7
        %v1082 = vsub.s32 4, %v1081
        %v1083 = vrot.slane %v1063, %v1082
        %v1084 = vlaneseq
        %v1085 = vshrl.u32 %v1084, 7
        %v1086 = vsub.s32 5, %v1085
        %v1087 = vrot.slane %v1063, %v1086
        %v1088 = vlaneseq
        %v1089 = vshrl.u32 %v1088, 7
        %v1090 = vsub.s32 6, %v1089
        %v1091 = vrot.slane %v1063, %v1090
        %v1092 = vlaneseq
        %v1093 = vshrl.u32 %v1092, 7
        %v1094 = vsub.s32 7, %v1093
        %v1095 = vrot.slane %v1063, %v1094
        %v1104 = vmul.f32 %v1052, %v1067
        %v1105 = vmul.f32 %v1053, %v1071
        %v1106 = vmul.f32 %v1054, %v1075
        %v1107 = vmul.f32 %v1055, %v1079
        %v1108 = vmul.f32 %v1056, %v1083
        %v1109 = vmul.f32 %v1057, %v1087
        %v1110 = vmul.f32 %v1058, %v1091
        %v1111 = vmul.f32 %v1059, %v1095
        %vm1112 = vcmp.ge.f32.partialorder %v1104, 0.0
        %vm1113 = vcmp.ge.f32.partialorder %v1105, 0.0
        %vm1114 = vcmp.ge.f32.partialorder %v1106, 0.0
        %vm1115 = vcmp.ge.f32.partialorder %v1107, 0.0
        %vm1116 = vcmp.ge.f32.partialorder %v1108, 0.0
        %vm1117 = vcmp.ge.f32.partialorder %v1109, 0.0
        %vm1118 = vcmp.ge.f32.partialorder %v1110, 0.0
        %vm1119 = vcmp.ge.f32.partialorder %v1111, 0.0
        %v1120 = vmul.f32 %v1104, 0.2
        %v1121 = vmul.f32 %v1105, 0.2
        %v1122 = vmul.f32 %v1106, 0.2
        %v1123 = vmul.f32 %v1107, 0.2
        %v1124 = vmul.f32 %v1108, 0.2
        %v1125 = vmul.f32 %v1109, 0.2
        %v1126 = vmul.f32 %v1110, 0.2
        %v1127 = vmul.f32 %v1111, 0.2
        %v1128 = vsel %vm1112, %v1104, %v1120
        %v1129 = vsel %vm1113, %v1105, %v1121
        %v1130 = vsel %vm1114, %v1106, %v1122
        %v1131 = vsel %vm1115, %v1107, %v1123
        %v1132 = vsel %vm1116, %v1108, %v1124
        %v1133 = vsel %vm1117, %v1109, %v1125
        %v1134 = vsel %vm1118, %v1110, %v1126
        %v1135 = vsel %vm1119, %v1111, %v1127
        %1136 = vst.msk [vmem:[%s299] sm:$0x1] %vm979, %v1128
        %1137 = vst.msk [vmem:[%s299 + $0x1] sm:$0x1] %vm979, %v1129
        %1138 = vst.msk [vmem:[%s299 + $0x2] sm:$0x1] %vm979, %v1130
        %1139 = vst.msk [vmem:[%s299 + $0x3] sm:$0x1] %vm979, %v1131
        %1140 = vst.msk [vmem:[%s299 + $0x4] sm:$0x1] %vm979, %v1132
        %1141 = vst.msk [vmem:[%s299 + $0x5] sm:$0x1] %vm979, %v1133
        %1142 = vst.msk [vmem:[%s299 + $0x6] sm:$0x1] %vm979, %v1134
        %1143 = vst.msk [vmem:[%s299 + $0x7] sm:$0x1] %vm979, %v1135
      $region44: #{_conv_inst_norm_lrelu.1} parent=35 // pred_fallthru
        _
      %p1144 = scmp.lt.s32.totalorder %s19, 1
      %s1145 = scalar_select %p1144, %s19, 1
      %s1146 = smul.addr %s1145, 8
      %s1147 = scalar_lea.vmem %s4, %s1146
      // Predicated region
      $region45: #{_conv_inst_norm_lrelu.1} parent=35 // pred_check
        %p1148 = pneg %p147
      $region46: #{_conv_inst_norm_lrelu.1} parent=35 // pred_check_branch
        %1150 = sbr.rel (%p1148) target = $region48
      $region47: #{_conv_inst_norm_lrelu.1} parent=35 // pred_region
        _
      $region48: #{_conv_inst_norm_lrelu.1} parent=35 // pred_fallthru
        _
    $region36: #{_conv_inst_norm_lrelu.1} parent=5 // pred_fallthru
      _
    %p1151 = scmp.le.s32.totalorder 2, %s10
    // Predicated region
    $region49: #{_conv_inst_norm_lrelu.1} parent=5 // pred_check
      %p1152 = pneg %p1151
    $region50: #{_conv_inst_norm_lrelu.1} parent=5 // pred_check_branch
      %1154 = sbr.rel (%p1152) target = $region52
    $region51: #{_conv_inst_norm_lrelu.1} parent=5 // pred_region
      %s1155 = ssub.s32 %s10, 2
      // Predicated region
      $region53: #{_conv_inst_norm_lrelu.1} parent=51 // pred_check
        %p1156 = pneg %p153
      $region54: #{_conv_inst_norm_lrelu.1} parent=51 // pred_check_branch
        %1158 = sbr.rel (%p1156) target = $region56
      $region55: #{_conv_inst_norm_lrelu.1} parent=51 // pred_region
        %p1159 = scmp.lt.s32.totalorder %s21, 1
        %s1160 = scalar_select %p1159, %s21, 1
        %s1161 = smul.addr %s1160, 8
        %s1162 = scalar_lea.vmem %s4, %s1161
      $region56: #{_conv_inst_norm_lrelu.1} parent=51 // pred_fallthru
        _
    $region52: #{_conv_inst_norm_lrelu.1} parent=5 // pred_fallthru
      _
  $region6: #{_conv_inst_norm_lrelu.1} parent=0 // loop_footer
    %s14 = sadd.s32 1, %s10
  $region7: #{_conv_inst_norm_lrelu.1} parent=0 // loop_footer_branch
    %9 = sbr.rel target = $region3
  $region8: #{_conv_inst_norm_lrelu.1} parent=0 // loop_exit
    _

</llo_original>
